<compile_context>
chip_gen: v6e
topology: v6e:2x2x1
jax: 0.10.0
libtpu: 0.0.40
codegen_flags: <defaults>
</compile_context>

<pallas_src>
import functools

import jax
import jax.numpy as jnp
import numpy as np
from jax.experimental import pallas as pl
from jax.experimental.pallas import tpu as pltpu


def _round_up(v, m):
    return ((v + m - 1) // m) * m


def _ldam_kernel(x_ref, tgt_ref, m_ref, out_ref, *, s, n_valid, blocks_per_part):
    p = pl.program_id(0)          # megacore partition
    i = pl.program_id(1)          # block within partition ("arbitrary" axis)

    @pl.when(i == 0)
    def _init():
        out_ref[0, 0] = jnp.float32(0.0)

    # Cast after the tile load: HBM traffic stays in the input dtype.
    x = x_ref[...].astype(jnp.float32)        # (TN, C)
    tgt = tgt_ref[...]                        # (TN, 1) int32
    m = m_ref[...]                            # (1, C)  f32

    tn, c = x.shape
    col = jax.lax.broadcasted_iota(jnp.int32, (1, c), 1)
    onehot = col == tgt                       # (TN, C) bool, scatter_(1, target, 1)

    # Fused margin subtraction + scale: only the target column gets the margin.
    logits = jnp.float32(s) * jnp.where(onehot, x - m, x)          # (TN, C)

    # log-sum-exp over classes (lane axis).
    mx = jnp.max(logits, axis=1, keepdims=True)
    lse = mx + jnp.log(jnp.sum(jnp.exp(logits - mx), axis=1, keepdims=True))

    # Target logit picked straight out of the already-margined logits.
    tgt_logit = jnp.sum(jnp.where(onehot, logits, 0.0), axis=1, keepdims=True)
    per_sample = lse - tgt_logit                                   # (TN, 1)

    blk = p * blocks_per_part + i
    # Edge tile == partial last tile or a clamped duplicate tile (grid padding).
    is_edge = (blk + 1) * tn > n_valid

    @pl.when(jnp.logical_not(is_edge))
    def _full_tile():
        out_ref[0, 0] += jnp.sum(per_sample)

    @pl.when(is_edge)
    def _edge_tile():
        row = blk * tn + jax.lax.broadcasted_iota(jnp.int32, (tn, 1), 0)
        out_ref[0, 0] += jnp.sum(jnp.where(row < n_valid, per_sample, 0.0))


def ldam_loss(x, target, m_list, s=30.0, tile_n=None):
    """x: (N, C) f32/bf16, target: (N,) int, m_list: (C,) -> scalar f32."""
    n, c = x.shape
    itemsize = x.dtype.itemsize
    sub = max(8, 32 // itemsize)          # sublane multiple: 8 f32, 16 bf16, 32 int8
    c_pad = _round_up(c, 128)             # lane-padded width (VMEM sizing model only)

    if tile_n is None:
        # 2x double-buffered input + ~5 f32 full-width temporaries per row,
        # kept under ~40 MiB so it is safe on v7x (64 MiB VMEM) and comfortably
        # amortizes the ~0.35 us per-grid-step overhead on v5e/v6e.
        per_row_bytes = c_pad * (2 * itemsize + 5 * 4)
        tile_n = max(sub, (40 * 1024 * 1024) // per_row_bytes)
        tile_n = min(tile_n, 4096)
    tn = _round_up(max(int(tile_n), sub), sub)
    if tn >= n:
        tn = n                            # full-dim block: always a legal block shape
    grid_n = pl.cdiv(n, tn)

    # v7x megacore split (2 TCs); on v5e/v6e the extra axis is a no-op.
    num_parts = 2 if grid_n >= 2 else 1
    g = pl.cdiv(grid_n, num_parts)
    last_blk = grid_n - 1

    tgt2d = target.astype(jnp.int32).reshape(n, 1)      # tiny
    m2d = m_list.astype(jnp.float32).reshape(1, c)      # tiny, stays VMEM-resident

    kernel = functools.partial(
        _ldam_kernel, s=float(s), n_valid=int(n), blocks_per_part=int(g))

    def row_block_map(p, i):
        # Clamp so the DMA window stays in-bounds; duplicated tail blocks are
        # fully masked in-kernel (their global rows are >= n).
        return (jnp.minimum(p * g + i, last_blk), 0)

    partials = pl.pallas_call(
        kernel,
        out_shape=jax.ShapeDtypeStruct((num_parts, 1), jnp.float32),
        grid_spec=pltpu.PrefetchScalarGridSpec(
            num_scalar_prefetch=0,
            grid=(num_parts, g),
            in_specs=[
                pl.BlockSpec((tn, c), row_block_map),        # x tile (no HBM pad)
                pl.BlockSpec((tn, 1), row_block_map),        # target tile
                pl.BlockSpec((1, c), lambda p, i: (0, 0)),   # m_list (resident)
            ],
            out_specs=pl.BlockSpec((1, 1), lambda p, i: (p, 0),
                                   memory_space=pltpu.SMEM),
        ),
        compiler_params=pltpu.CompilerParams(
            dimension_semantics=("parallel", "arbitrary"),
            vmem_limit_bytes=48 * 1024 * 1024,
        ),
    )(x, tgt2d, m2d)

    # Per-partition f32 partials summed (and averaged) in the wrapper.
    return jnp.sum(partials) / jnp.float32(n)


def make_m_list(cls_num_list, max_m=0.5):
    # Deterministic parameter setup mirroring TorchLDAMLoss.__init__
    cls_num = np.asarray(cls_num_list, dtype=np.float64)
    m = 1.0 / np.sqrt(np.sqrt(cls_num))
    m = m * (max_m / np.max(m))
    return jnp.asarray(m, dtype=jnp.float32)


def ldam_loss_ref(x, target, m_list, s=30.0):
    # Pure-JAX reference (weight=None, mean reduction).
    x = x.astype(jnp.float32)
    n, c = x.shape
    onehot = jax.nn.one_hot(target, c, dtype=jnp.float32)
    batch_m = jnp.sum(onehot * m_list[None, :], axis=1, keepdims=True)
    output = jnp.where(onehot.astype(bool), x - batch_m, x)
    logits = s * output
    logp = jax.nn.log_softmax(logits, axis=1)
    return -jnp.mean(jnp.sum(onehot * logp, axis=1))


if __name__ == "__main__":
    key = jax.random.PRNGKey(0)
    k1, k2, k3, k4 = jax.random.split(key, 4)

    # Case 1: small shapes mirroring the module (single tile, C < 128).
    N, C = 8, 16
    x = jax.random.normal(k1, (N, C), dtype=jnp.float32)
    target = jax.random.randint(k2, (N,), 0, C, dtype=jnp.int32)
    m_list = make_m_list([10 * (i + 1) for i in range(C)], max_m=0.5)

    loss = jax.block_until_ready(ldam_loss(x, target, m_list, s=30.0))
    ref = jax.block_until_ready(ldam_loss_ref(x, target, m_list, s=30.0))
    assert jnp.allclose(loss, ref, rtol=1e-5, atol=1e-5), (loss, ref)

    # Case 2: multi-tile grid exercising the megacore split, partial last tile,
    # and the clamped duplicate block (grid_n=3 over 2 partitions).
    N2, C2 = 40, 20
    x2 = jax.random.normal(k3, (N2, C2), dtype=jnp.float32)
    target2 = jax.random.randint(k4, (N2,), 0, C2, dtype=jnp.int32)
    m_list2 = make_m_list([5 * (i + 2) for i in range(C2)], max_m=0.5)

    loss2 = jax.block_until_ready(ldam_loss(x2, target2, m_list2, s=30.0, tile_n=16))
    ref2 = jax.block_until_ready(ldam_loss_ref(x2, target2, m_list2, s=30.0))
    assert jnp.allclose(loss2, ref2, rtol=1e-5, atol=1e-5), (loss2, ref2)

    # Case 3: bf16 logits in HBM (kernel casts to f32 after the tile load).
    x_bf = x.astype(jnp.bfloat16)
    loss3 = jax.block_until_ready(ldam_loss(x_bf, target, m_list, s=30.0))
    ref3 = jax.block_until_ready(ldam_loss_ref(x_bf, target, m_list, s=30.0))
    assert jnp.allclose(loss3, ref3, rtol=1e-5, atol=1e-5), (loss3, ref3)

    print("KERNEL_OK")
</pallas_src>

<mosaic_0001>
module attributes {stable_mosaic.version = 11 : i64} {
  func.func @_ldam_kernel(%arg0: i32, %arg1: i32, %arg2: memref<8x16xf32, #tpu.memory_space<vmem>>, %arg3: memref<8x1xi32, #tpu.memory_space<vmem>>, %arg4: memref<1x16xf32, #tpu.memory_space<vmem>>, %arg5: memref<1x1xf32, #tpu.memory_space<smem>>) attributes {dimension_semantics = [#tpu.dimension_semantics<parallel>, #tpu.dimension_semantics<arbitrary>], iteration_bounds = array<i64: 1, 1>, scalar_prefetch = 0 : i64, scratch_operands = 0 : i64, tpu.core_type = #tpu.core_type<tc>, window_params = [{transform_indices = @transform_0, window_bounds = array<i64: 8, 16>}, {transform_indices = @transform_1, window_bounds = array<i64: 8, 1>}, {pipeline_mode = #tpu.pipeline_mode<synchronous>, transform_indices = @transform_2, window_bounds = array<i64: 1, 16>}, {transform_indices = @transform_3, window_bounds = array<i64: 1, 1>}]} {
    %c0_i32 = arith.constant 0 : i32
    %0 = arith.cmpi eq, %arg1, %c0_i32 : i32
    %1 = arith.extui %0 : i1 to i32
    %c0_i32_0 = arith.constant 0 : i32
    %2 = arith.cmpi ne, %1, %c0_i32_0 : i32
    scf.if %2 {
      %cst_14 = arith.constant 0.000000e+00 : f32
      %c0_15 = arith.constant 0 : index
      %c0_16 = arith.constant 0 : index
      %39 = memref.load %arg5[%c0_15, %c0_16] : memref<1x1xf32, #tpu.memory_space<smem>>
      memref.store %cst_14, %arg5[%c0_15, %c0_16] : memref<1x1xf32, #tpu.memory_space<smem>>
    } else {
    }
    %c0 = arith.constant 0 : index
    %c0_1 = arith.constant 0 : index
    %3 = vector.load %arg2[%c0, %c0_1] : memref<8x16xf32, #tpu.memory_space<vmem>>, vector<8x16xf32>
    %c0_2 = arith.constant 0 : index
    %c0_3 = arith.constant 0 : index
    %4 = vector.load %arg3[%c0_2, %c0_3] : memref<8x1xi32, #tpu.memory_space<vmem>>, vector<8x1xi32>
    %c0_4 = arith.constant 0 : index
    %c0_5 = arith.constant 0 : index
    %5 = vector.load %arg4[%c0_4, %c0_5] : memref<1x16xf32, #tpu.memory_space<vmem>>, vector<1x16xf32>
    %6 = tpu.iota {dimensions = array<i32: 1>} : vector<1x16xi32>
    %7 = vector.broadcast %6 : vector<1x16xi32> to vector<8x16xi32>
    %8 = vector.broadcast %4 : vector<8x1xi32> to vector<8x16xi32>
    %9 = arith.cmpi eq, %7, %8 : vector<8x16xi32>
    %10 = vector.broadcast %5 : vector<1x16xf32> to vector<8x16xf32>
    %11 = arith.subf %3, %10 : vector<8x16xf32>
    %12 = arith.select %9, %11, %3 : vector<8x16xi1>, vector<8x16xf32>
    %cst = arith.constant 3.000000e+01 : f32
    %13 = vector.broadcast %cst : f32 to vector<8x16xf32>
    %14 = arith.mulf %13, %12 : vector<8x16xf32>
    %cst_6 = arith.constant dense<0xFF800000> : vector<8xf32>
    %15 = vector.multi_reduction <maximumf>, %14, %cst_6 [1] : vector<8x16xf32> to vector<8xf32>
    %16 = vector.shape_cast %15 : vector<8xf32> to vector<8x1xf32>
    %17 = vector.broadcast %16 : vector<8x1xf32> to vector<8x16xf32>
    %18 = arith.subf %14, %17 : vector<8x16xf32>
    %19 = math.exp %18 : vector<8x16xf32>
    %cst_7 = arith.constant dense<0.000000e+00> : vector<8xf32>
    %20 = vector.multi_reduction <add>, %19, %cst_7 [1] : vector<8x16xf32> to vector<8xf32>
    %21 = vector.shape_cast %20 : vector<8xf32> to vector<8x1xf32>
    %22 = math.log %21 : vector<8x1xf32>
    %23 = arith.addf %16, %22 : vector<8x1xf32>
    %cst_8 = arith.constant 0.000000e+00 : f32
    %24 = vector.broadcast %cst_8 : f32 to vector<8x16xf32>
    %25 = arith.select %9, %14, %24 : vector<8x16xi1>, vector<8x16xf32>
    %cst_9 = arith.constant dense<0.000000e+00> : vector<8xf32>
    %26 = vector.multi_reduction <add>, %25, %cst_9 [1] : vector<8x16xf32> to vector<8xf32>
    %27 = vector.shape_cast %26 : vector<8xf32> to vector<8x1xf32>
    %28 = arith.subf %23, %27 : vector<8x1xf32>
    %c1_i32 = arith.constant 1 : i32
    %29 = arith.muli %arg0, %c1_i32 : i32
    %30 = arith.addi %29, %arg1 : i32
    %c1_i32_10 = arith.constant 1 : i32
    %31 = arith.addi %30, %c1_i32_10 : i32
    %c8_i32 = arith.constant 8 : i32
    %32 = arith.muli %31, %c8_i32 : i32
    %c8_i32_11 = arith.constant 8 : i32
    %33 = arith.cmpi sgt, %32, %c8_i32_11 : i32
    %true = arith.constant true
    %34 = arith.xori %33, %true : i1
    %35 = arith.extui %34 : i1 to i32
    %c0_i32_12 = arith.constant 0 : i32
    %36 = arith.cmpi ne, %35, %c0_i32_12 : i32
    scf.if %36 {
      %c0_14 = arith.constant 0 : index
      %c0_15 = arith.constant 0 : index
      %39 = memref.load %arg5[%c0_14, %c0_15] : memref<1x1xf32, #tpu.memory_space<smem>>
      %40 = vector.shape_cast %28 : vector<8x1xf32> to vector<1x8x1xf32>
      %cst_16 = arith.constant dense<0.000000e+00> : vector<1xf32>
      %41 = vector.multi_reduction <add>, %40, %cst_16 [1, 2] : vector<1x8x1xf32> to vector<1xf32>
      %42 = vector.shape_cast %41 : vector<1xf32> to vector<1x1x1xf32>
      %43 = vector.extract %42[0, 0, 0] : f32 from vector<1x1x1xf32>
      %44 = arith.addf %39, %43 : f32
      %c0_17 = arith.constant 0 : index
      %c0_18 = arith.constant 0 : index
      %45 = memref.load %arg5[%c0_17, %c0_18] : memref<1x1xf32, #tpu.memory_space<smem>>
      memref.store %44, %arg5[%c0_17, %c0_18] : memref<1x1xf32, #tpu.memory_space<smem>>
    } else {
    }
    %37 = arith.extui %33 : i1 to i32
    %c0_i32_13 = arith.constant 0 : i32
    %38 = arith.cmpi ne, %37, %c0_i32_13 : i32
    scf.if %38 {
      %c8_i32_14 = arith.constant 8 : i32
      %39 = arith.muli %30, %c8_i32_14 : i32
      %40 = tpu.iota {dimensions = array<i32: 0>} : vector<8x1xi32>
      %41 = vector.broadcast %39 : i32 to vector<8x1xi32>
      %42 = arith.addi %41, %40 : vector<8x1xi32>
      %c0_15 = arith.constant 0 : index
      %c0_16 = arith.constant 0 : index
      %43 = memref.load %arg5[%c0_15, %c0_16] : memref<1x1xf32, #tpu.memory_space<smem>>
      %c8_i32_17 = arith.constant 8 : i32
      %44 = vector.broadcast %c8_i32_17 : i32 to vector<8x1xi32>
      %45 = arith.cmpi slt, %42, %44 : vector<8x1xi32>
      %cst_18 = arith.constant 0.000000e+00 : f32
      %46 = vector.broadcast %cst_18 : f32 to vector<8x1xf32>
      %47 = arith.select %45, %28, %46 : vector<8x1xi1>, vector<8x1xf32>
      %48 = vector.shape_cast %47 : vector<8x1xf32> to vector<1x8x1xf32>
      %cst_19 = arith.constant dense<0.000000e+00> : vector<1xf32>
      %49 = vector.multi_reduction <add>, %48, %cst_19 [1, 2] : vector<1x8x1xf32> to vector<1xf32>
      %50 = vector.shape_cast %49 : vector<1xf32> to vector<1x1x1xf32>
      %51 = vector.extract %50[0, 0, 0] : f32 from vector<1x1x1xf32>
      %52 = arith.addf %43, %51 : f32
      %c0_20 = arith.constant 0 : index
      %c0_21 = arith.constant 0 : index
      %53 = memref.load %arg5[%c0_20, %c0_21] : memref<1x1xf32, #tpu.memory_space<smem>>
      memref.store %52, %arg5[%c0_20, %c0_21] : memref<1x1xf32, #tpu.memory_space<smem>>
    } else {
    }
    return
  }
  func.func @transform_0(%arg0: i32, %arg1: i32) -> (i32, i32) {
    %c1_i32 = arith.constant 1 : i32
    %0 = arith.muli %arg0, %c1_i32 : i32
    %1 = arith.addi %0, %arg1 : i32
    %c0_i32 = arith.constant 0 : i32
    %2 = arith.minsi %1, %c0_i32 : i32
    %c0_i32_0 = arith.constant 0 : i32
    %c0_i32_1 = arith.constant 0 : i32
    return %2, %c0_i32_0 : i32, i32
  }
  func.func @transform_1(%arg0: i32, %arg1: i32) -> (i32, i32) {
    %c1_i32 = arith.constant 1 : i32
    %0 = arith.muli %arg0, %c1_i32 : i32
    %1 = arith.addi %0, %arg1 : i32
    %c0_i32 = arith.constant 0 : i32
    %2 = arith.minsi %1, %c0_i32 : i32
    %c0_i32_0 = arith.constant 0 : i32
    %c0_i32_1 = arith.constant 0 : i32
    return %2, %c0_i32_0 : i32, i32
  }
  func.func @transform_2(%arg0: i32, %arg1: i32) -> (i32, i32) {
    %c0_i32 = arith.constant 0 : i32
    %c0_i32_0 = arith.constant 0 : i32
    %c0_i32_1 = arith.constant 0 : i32
    return %c0_i32, %c0_i32_0 : i32, i32
  }
  func.func @transform_3(%arg0: i32, %arg1: i32) -> (i32, i32) {
    %c0_i32 = arith.constant 0 : i32
    %c0_i32_0 = arith.constant 0 : i32
    return %arg0, %c0_i32 : i32, i32
  }
}

</mosaic_0001>

<llo_original>
// kernel: tpu_custom_call.1
$region0: #{tpu_custom_call.1}
  #allocation0 [shape = 'u32[]', space=smem, size = 0x4, offset = 0x4, fixed_abs, tag = 'smem constant byte address 0x4 - core index']
  #allocation1 [shape = 'u32[144,128]{1,0:T(1,128)}', space=vmem, size = 0x12000, scoped, tag = 'internal scratch']
  %s0 = inlined_call_operand.vmem [shape: f32[8,16], index: 0, kind: input, shape index: {}]
  %s1 = inlined_call_operand.vmem [shape: s32[8,1], index: 1, kind: input, shape index: {}]
  %s2 = inlined_call_operand.vmem [shape: f32[1,16], index: 2, kind: input, shape index: {}]
  %s3 = inlined_call_operand.hbm [shape: f32[1,1], index: 3, kind: output, shape index: {}]
  %s4 = sld [smem:[#allocation0]]
  $region34: #{tpu_custom_call.1} parent=0
    _
  %s6 = ssub.s32 1, %s4
  %s7 = scalar_select 0, %s6, %s4
  $region1: #{tpu_custom_call.1} parent=0
    #allocation2 [shape = 'u8[512]{0}', space=smem, size = 0x200, scoped, tag = 'output window, operand 0, single buffered']
    #allocation3 [shape = 's32[1]{0}', space=sflag, size = 0x4, scoped, tag = 'scoped memory for tpu_custom_call.1']
    %8 = vsyncpa [#allocation3], 0
    // Predicated region
    $region2: #{tpu_custom_call.1} parent=1 // pred_check
      _
    $region3: #{tpu_custom_call.1} parent=1 // pred_check_branch
      %10 = sbr.rel (0) target = $region5
    $region4: #{tpu_custom_call.1} parent=1 // pred_region
      %s11 = sadd.s32 0, 0
      %p12 = scmp.lt.s32.totalorder %s11, 0
      %s13 = scalar_select %p12, %s11, 0
      %p14 = scmp.lt.s32.totalorder %s13, 0
      %s15 = scalar_select %p14, %s13, 0
      %s16 = smul.addr %s15, 8
      %s17 = scalar_lea.vmem %s0, %s16
      %s18 = sadd.s32 0, 0
      %p19 = scmp.lt.s32.totalorder %s18, 0
      %s20 = scalar_select %p19, %s18, 0
    $region5: #{tpu_custom_call.1} parent=1 // pred_fallthru
      _
    // Predicated region
    $region6: #{tpu_custom_call.1} parent=1 // pred_check
      _
    $region7: #{tpu_custom_call.1} parent=1 // pred_check_branch
      %22 = sbr.rel (0) target = $region9
    $region8: #{tpu_custom_call.1} parent=1 // pred_region
      %s23 = sadd.s32 0, 0
      %p24 = scmp.lt.s32.totalorder %s23, 0
      %s25 = scalar_select %p24, %s23, 0
      %p26 = scmp.lt.s32.totalorder %s25, 0
      %s27 = scalar_select %p26, %s25, 0
      %s28 = smul.addr %s27, 8
      %s29 = scalar_lea.vmem %s1, %s28
      %s30 = sadd.s32 0, 0
      %p31 = scmp.lt.s32.totalorder %s30, 0
      %s32 = scalar_select %p31, %s30, 0
    $region9: #{tpu_custom_call.1} parent=1 // pred_fallthru
      _
    // Predicated region
    $region10: #{tpu_custom_call.1} parent=1 // pred_check
      _
    $region11: #{tpu_custom_call.1} parent=1 // pred_check_branch
      %34 = sbr.rel (0) target = $region13
    $region12: #{tpu_custom_call.1} parent=1 // pred_region
      _
    $region13: #{tpu_custom_call.1} parent=1 // pred_fallthru
      _
    %s35 = sadd.s32 0, 0
    %p36 = scmp.lt.s32.totalorder %s35, 0
    %s37 = scalar_select %p36, %s35, 0
    %p38 = scmp.lt.s32.totalorder %s37, 0
    %s39 = scalar_select %p38, %s37, 0
    %s40 = smul.addr %s39, 8
    %s41 = scalar_lea.vmem %s0, %s40
    %s42 = sadd.s32 0, 0
    %p43 = scmp.lt.s32.totalorder %s42, 0
    %s44 = scalar_select %p43, %s42, 0
    %p45 = scmp.lt.s32.totalorder %s44, 0
    %s46 = scalar_select %p45, %s44, 0
    %s47 = smul.addr %s46, 8
    %s48 = scalar_lea.vmem %s1, %s47
    %s49 = sadd.s32 0, 0
    %p50 = scmp.lt.s32.totalorder %s49, 0
    %s51 = scalar_select %p50, %s49, 0
    %p52 = scmp.lt.s32.totalorder %s51, 0
    %s53 = scalar_select %p52, %s51, 0
    %s54 = smul.addr %s53, 8
    %s55 = scalar_lea.vmem %s0, %s54
    %s56 = sadd.s32 0, 0
    %p57 = scmp.lt.s32.totalorder %s56, 0
    %s58 = scalar_select %p57, %s56, 0
    %s59 = sadd.s32 0, 0
    %p60 = scmp.lt.s32.totalorder %s59, 0
    %s61 = scalar_select %p60, %s59, 0
    %p62 = scmp.lt.s32.totalorder %s61, 0
    %s63 = scalar_select %p62, %s61, 0
    %s64 = smul.addr %s63, 8
    %s65 = scalar_lea.vmem %s1, %s64
    %s66 = sadd.s32 0, 0
    %p67 = scmp.lt.s32.totalorder %s66, 0
    %s68 = scalar_select %p67, %s66, 0
    %p69 = scmp.eq.s32.totalorder 0, 0
    // Predicated region
    $region14: #{tpu_custom_call.1} parent=1 // pred_check
      %p70 = pneg %p69
    $region15: #{tpu_custom_call.1} parent=1 // pred_check_branch
      %72 = sbr.rel (%p70) target = $region17
    $region16: #{tpu_custom_call.1} parent=1 // pred_region
      %s73 = scalar_lea.smem [#allocation2], 0
      %74 = sst [smem:[%s73]] 0.0
    $region17: #{tpu_custom_call.1} parent=1 // pred_fallthru
      _
    %v75 = vld [vmem:[%s55] sm:$0xff]
    %v76 = vld [vmem:[%s65] sm:$0xff]
    %v77 = vld [vmem:[%s2] sm:$0x1]
    %v78 = vlaneseq
    %v79 = vand.u32 %v78, 127
    %80 = vset.pattern.permute.xlu0 0
    %81 = vperm.xlu0 %80, %v76
    %v82 = vpop.permute.xlu0 %81
    %vm83 = vcmp.eq.s32.totalorder %v79, %v82
    %v85 = vlaneseq
    %v86 = vshrl.u32 %v85, 7
    %v87 = vsub.s32 0, %v86
    %v88 = vrot.slane %v77, %v87
    %v90 = vsub.f32 %v75, %v88
    %v91 = vsel %vm83, %v90, %v75
    %v92 = vmul.f32 %v91, 30.0
    %vm93 = vcmask 130048
    %v94 = vsel %vm93, %v92, -inf
    %95 = vmax.xlane.f32.xlu0 %v94
    %v96 = vpop.xlane.xlu0 %95
    %v97 = vsub.f32 %v92, %v96
    %v98 = vmul.f32 %v97, 1.442695
    %v99 = vpow.pop %v98
    %v100 = vsel %vm93, %v99, 0.0
    %101 = vadd.xlane.f32.xlu0 %v100
    %v102 = vpop.xlane.xlu0 %101
    %v103 = vlog2.pop %v102
    %v104 = vmul.f32 %v103, 0.6931472
    %v105 = vadd.f32 %v96, %v104
    %v106 = vsel %vm83, %v92, 0.0
    %v107 = vsel %vm93, %v106, 0.0
    %108 = vadd.xlane.f32.xlu0 %v107
    %v109 = vpop.xlane.xlu0 %108
    %v110 = vsub.f32 %v105, %v109
    %s111 = sadd.s32 0, 0
    %s112 = sadd.s32 %s111, 1
    %s113 = smul.u32 %s112, 8
    %p114 = scmp.gt.s32.totalorder %s113, 8
    %p115 = scmp.le.s32.totalorder %s113, 8
    // Predicated region
    $region18: #{tpu_custom_call.1} parent=1 // pred_check
      %p116 = pneg %p115
    $region19: #{tpu_custom_call.1} parent=1 // pred_check_branch
      %118 = sbr.rel (%p116) target = $region21
    $region20: #{tpu_custom_call.1} parent=1 // pred_region
      %s119 = sld [smem:[#allocation2]]
      %vm120 = vcmask 7168
      %v121 = vsel %vm120, %v110, 0.0
      %122 = vadd.xlane.f32.xlu0 %v121
      %v123 = vpop.xlane.xlu0 %122
      %v124 = vrot.slane %v123, 4
      %v125 = vadd.f32 %v123, %v124
      %v126 = vrot.slane %v125, 2
      %v127 = vadd.f32 %v125, %v126
      %v128 = vrot.slane %v127, 1
      %v129 = vadd.f32 %v127, %v128
      %s130 = vtos %v129
      %s131 = sadd.f32 %s119, %s130
      %s132 = scalar_lea.smem [#allocation2], 0
      %133 = sst [smem:[%s132]] %s131
    $region21: #{tpu_custom_call.1} parent=1 // pred_fallthru
      _
    // Predicated region
    $region22: #{tpu_custom_call.1} parent=1 // pred_check
      %p134 = pneg %p114
    $region23: #{tpu_custom_call.1} parent=1 // pred_check_branch
      %136 = sbr.rel (%p134) target = $region25
    $region24: #{tpu_custom_call.1} parent=1 // pred_region
      %s137 = smul.u32 %s111, 8
      %v138 = vlaneseq
      %v139 = vshrl.u32 %v138, 7
      %v140 = vstv %s137
      %v141 = vadd.s32 %v140, %v139
      %s142 = sld [smem:[#allocation2]]
      %vm143 = vcmp.lt.s32.totalorder %v141, 8
      %v144 = vsel %vm143, %v110, 0.0
      %vm145 = vcmask 7168
      %v146 = vsel %vm145, %v144, 0.0
      %147 = vadd.xlane.f32.xlu0 %v146
      %v148 = vpop.xlane.xlu0 %147
      %v149 = vrot.slane %v148, 4
      %v150 = vadd.f32 %v148, %v149
      %v151 = vrot.slane %v150, 2
      %v152 = vadd.f32 %v150, %v151
      %v153 = vrot.slane %v152, 1
      %v154 = vadd.f32 %v152, %v153
      %s155 = vtos %v154
      %s156 = sadd.f32 %s142, %s155
      %s157 = scalar_lea.smem [#allocation2], 0
      %158 = sst [smem:[%s157]] %s156
    $region25: #{tpu_custom_call.1} parent=1 // pred_fallthru
      _
    // Predicated region
    $region26: #{tpu_custom_call.1} parent=1 // pred_check
      _
    $region27: #{tpu_custom_call.1} parent=1 // pred_check_branch
      %160 = sbr.rel (0) target = $region29
    $region28: #{tpu_custom_call.1} parent=1 // pred_region
      %s162 = ssub.s32 16, 16
      %163 = vsyncadd [#allocation3], %s162
      %166 = dma.smem_to_hbm [#allocation2], 16, %s3, [#allocation3]
    $region29: #{tpu_custom_call.1} parent=1 // pred_fallthru
      _
    // Predicated region
    $region30: #{tpu_custom_call.1} parent=1 // pred_check
      _
    $region31: #{tpu_custom_call.1} parent=1 // pred_check_branch
      %168 = sbr.rel (0) target = $region33
    $region32: #{tpu_custom_call.1} parent=1 // pred_region
      %169 = dma.done [#allocation3], 16
    $region33: #{tpu_custom_call.1} parent=1 // pred_fallthru
      _
    %170 = sfence
    %171 = vsyncpa [#allocation3], 1

</llo_original>
